<compile_context>
chip_gen: v5e
topology: v5e:2x2
jax: 0.10.0
libtpu: 0.0.40
codegen_flags: <defaults>
</compile_context>

<pallas_src>
import math

import jax
import jax.numpy as jnp
from jax.experimental import pallas as pl
from jax.experimental.pallas import tpu as pltpu

_INV_SQRT2 = 0.7071067811865476  # 1/sqrt(2), precomputed (no in-kernel divide)


def _make_ffn_kernel(lp, approximate_gelu, bf16_matmul):
    """Build the FFN kernel specialised for lane-packing factor `lp`."""

    def kernel(x_ref, g_ref, be_ref, w1_ref, b1_ref, w2_ref, b2_ref, *rest):
        if lp > 1:
            mavg_ref, o_ref = rest
        else:
            (o_ref,) = rest

        x = x_ref[...].astype(jnp.float32)          # (TP, L) lane-dense

        # LayerNorm over each d_model-wide lane segment (stats stay in f32).
        if lp > 1:
            mavg = mavg_ref[...]                    # block-diag averaging matrix
            mean = jnp.dot(x, mavg, preferred_element_type=jnp.float32)
            xc = x - mean
            var = jnp.dot(xc * xc, mavg, preferred_element_type=jnp.float32)
        else:
            mean = jnp.mean(x, axis=-1, keepdims=True)
            xc = x - mean
            var = jnp.mean(xc * xc, axis=-1, keepdims=True)
        z = xc * jax.lax.rsqrt(var + 1e-5) * g_ref[...] + be_ref[...]

        # linear1 (block-diagonal) -> GELU
        if bf16_matmul:
            z = z.astype(jnp.bfloat16)
        h = jnp.dot(z, w1_ref[...], preferred_element_type=jnp.float32) + b1_ref[...]
        if approximate_gelu:
            h = jax.nn.gelu(h, approximate=True)                    # tanh -> EUP
        else:
            h = 0.5 * h * (1.0 + jax.lax.erf(h * _INV_SQRT2))       # exact nn.GELU()

        # linear2 (block-diagonal) + residual (dropout = identity in eval).
        if bf16_matmul:
            h = h.astype(jnp.bfloat16)
        y = jnp.dot(h, w2_ref[...], preferred_element_type=jnp.float32) + b2_ref[...]

        o_ref[...] = (x + y).astype(o_ref.dtype)

    return kernel


def feed_forward_sublayer(x, gamma, beta, w1, b1, w2, b2, *,
                          row_tile=1024, approximate_gelu=False,
                          bf16_matmul=False):
    """x: [B, S, D] float32.  Weights use (in, out) layout so the kernel does z @ W."""
    B, S, D = x.shape
    F = w1.shape[1]
    N = B * S

    # Lane-packing factor: how many logical rows share one 128-lane row.
    lp = 128 // D if (D < 128 and 128 % D == 0) else 1
    L, LF = lp * D, lp * F

    # Packed parameters (built once, outside the kernel; tiny at these dims).
    if lp > 1:
        eye = jnp.eye(lp, dtype=jnp.float32)
        w1_p = jnp.kron(eye, w1.astype(jnp.float32))                  # (L, LF)
        w2_p = jnp.kron(eye, w2.astype(jnp.float32))                  # (LF, L)
        g_p = jnp.tile(gamma.astype(jnp.float32), lp).reshape(1, L)
        be_p = jnp.tile(beta.astype(jnp.float32), lp).reshape(1, L)
        b1_p = jnp.tile(b1.astype(jnp.float32), lp).reshape(1, LF)
        b2_p = jnp.tile(b2.astype(jnp.float32), lp).reshape(1, L)
        mavg = jnp.kron(eye, jnp.full((D, D), 1.0 / D, jnp.float32))  # (L, L)
    else:
        w1_p, w2_p = w1.astype(jnp.float32), w2.astype(jnp.float32)
        g_p = gamma.reshape(1, D).astype(jnp.float32)
        be_p = beta.reshape(1, D).astype(jnp.float32)
        b1_p = b1.reshape(1, F).astype(jnp.float32)
        b2_p = b2.reshape(1, D).astype(jnp.float32)
        mavg = None
    if bf16_matmul:
        w1_p = w1_p.astype(jnp.bfloat16)
        w2_p = w2_p.astype(jnp.bfloat16)

    # Row tiling in the packed view (sublane dim must be a multiple of 8).
    # Keep the grid >= 2 steps when there is enough work (v7x has 2 TCs).
    p_need = pl.cdiv(N, lp)                               # packed rows needed
    tp_req = max(8, 8 * (row_tile // (8 * lp)))           # requested packed tile
    half = 8 * pl.cdiv(pl.cdiv(p_need, 2), 8)
    tp = max(8, min(tp_req, half))
    grid_n = pl.cdiv(p_need, tp)
    P = grid_n * tp                                       # padded packed rows
    Np = P * lp                                           # padded logical rows

    x2 = x.reshape(N, D)
    if Np != N:
        x2 = jnp.concatenate([x2, jnp.zeros((Np - N, D), x2.dtype)], axis=0)
    xp = x2.reshape(P, L)                                 # free row-major repack

    in_specs = [
        pl.BlockSpec((tp, L), lambda i: (i, 0)),          # x rows (packed)
        pl.BlockSpec((1, L), lambda i: (0, 0)),           # gamma (tiled)
        pl.BlockSpec((1, L), lambda i: (0, 0)),           # beta  (tiled)
        pl.BlockSpec((L, LF), lambda i: (0, 0)),          # W1 (block-diag)
        pl.BlockSpec((1, LF), lambda i: (0, 0)),          # b1 (tiled)
        pl.BlockSpec((LF, L), lambda i: (0, 0)),          # W2 (block-diag)
        pl.BlockSpec((1, L), lambda i: (0, 0)),           # b2 (tiled)
    ]
    args = [xp, g_p, be_p, w1_p, b1_p, w2_p, b2_p]
    if lp > 1:
        in_specs.append(pl.BlockSpec((L, L), lambda i: (0, 0)))   # LN avg matrix
        args.append(mavg)
    # TODO(synk): at production d_model/dim_feedforward sizes, mark the
    # grid-invariant weight specs pipeline_mode=pl.Buffered(1) (skip
    # double-buffering) and re-derive row_tile against v7x's 64 MiB VMEM.

    out = pl.pallas_call(
        _make_ffn_kernel(lp, approximate_gelu, bf16_matmul),
        out_shape=jax.ShapeDtypeStruct((P, L), x.dtype),
        grid_spec=pltpu.PrefetchScalarGridSpec(
            num_scalar_prefetch=0,
            grid=(grid_n,),
            in_specs=in_specs,
            out_specs=pl.BlockSpec((tp, L), lambda i: (i, 0)),
        ),
        compiler_params=pltpu.CompilerParams(
            dimension_semantics=("parallel",),
        ),
    )(*args)

    return out.reshape(Np, D)[:N].reshape(B, S, D)


def _reference(x, gamma, beta, w1, b1, w2, b2):
    mean = jnp.mean(x, axis=-1, keepdims=True)
    var = jnp.mean(jnp.square(x - mean), axis=-1, keepdims=True)
    z = (x - mean) / jnp.sqrt(var + 1e-5) * gamma + beta
    h = z @ w1 + b1
    h = 0.5 * h * (1.0 + jax.lax.erf(h / math.sqrt(2.0)))
    y = h @ w2 + b2
    return x + y


if __name__ == "__main__":
    # Small shapes implied by the module: d_model=32, dim_feedforward=64.
    B, S, D, F = 2, 8, 32, 64

    key = jax.random.PRNGKey(0)
    kx, k1, k2, k3, k4 = jax.random.split(key, 5)

    x = jax.random.normal(kx, (B, S, D), dtype=jnp.float32)

    # Deterministic parameter init (synthetic; PyTorch Linear stores (out,in),
    # here we keep the mathematically equivalent (in,out) layout).
    w1 = jax.random.normal(k1, (D, F), dtype=jnp.float32) * (1.0 / math.sqrt(D))
    b1 = jax.random.normal(k2, (F,), dtype=jnp.float32) * 0.01
    w2 = jax.random.normal(k3, (F, D), dtype=jnp.float32) * (1.0 / math.sqrt(F))
    b2 = jax.random.normal(k4, (D,), dtype=jnp.float32) * 0.01
    gamma = jnp.ones((D,), dtype=jnp.float32)
    beta = jnp.zeros((D,), dtype=jnp.float32)

    out = feed_forward_sublayer(x, gamma, beta, w1, b1, w2, b2)
    out = jax.block_until_ready(out)

    ref = _reference(x, gamma, beta, w1, b1, w2, b2)
    assert out.shape == (B, S, D)
    assert jnp.allclose(out, ref, atol=2e-4, rtol=2e-4), "mismatch vs reference"

    print("KERNEL_OK")
</pallas_src>

<mosaic_0001>
module attributes {stable_mosaic.version = 11 : i64} {
  func.func @kernel(%arg0: i32, %arg1: memref<8x128xf32, #tpu.memory_space<vmem>>, %arg2: memref<1x128xf32, #tpu.memory_space<vmem>>, %arg3: memref<1x128xf32, #tpu.memory_space<vmem>>, %arg4: memref<128x256xf32, #tpu.memory_space<vmem>>, %arg5: memref<1x256xf32, #tpu.memory_space<vmem>>, %arg6: memref<256x128xf32, #tpu.memory_space<vmem>>, %arg7: memref<1x128xf32, #tpu.memory_space<vmem>>, %arg8: memref<128x128xf32, #tpu.memory_space<vmem>>, %arg9: memref<8x128xf32, #tpu.memory_space<vmem>>) attributes {dimension_semantics = [#tpu.dimension_semantics<parallel>], iteration_bounds = array<i64: 1>, scalar_prefetch = 0 : i64, scratch_operands = 0 : i64, tpu.core_type = #tpu.core_type<tc>, window_params = [{transform_indices = @transform_0, window_bounds = array<i64: 8, 128>}, {pipeline_mode = #tpu.pipeline_mode<synchronous>, transform_indices = @transform_1, window_bounds = array<i64: 1, 128>}, {pipeline_mode = #tpu.pipeline_mode<synchronous>, transform_indices = @transform_2, window_bounds = array<i64: 1, 128>}, {pipeline_mode = #tpu.pipeline_mode<synchronous>, transform_indices = @transform_3, window_bounds = array<i64: 128, 256>}, {pipeline_mode = #tpu.pipeline_mode<synchronous>, transform_indices = @transform_4, window_bounds = array<i64: 1, 256>}, {pipeline_mode = #tpu.pipeline_mode<synchronous>, transform_indices = @transform_5, window_bounds = array<i64: 256, 128>}, {pipeline_mode = #tpu.pipeline_mode<synchronous>, transform_indices = @transform_6, window_bounds = array<i64: 1, 128>}, {pipeline_mode = #tpu.pipeline_mode<synchronous>, transform_indices = @transform_7, window_bounds = array<i64: 128, 128>}, {transform_indices = @transform_8, window_bounds = array<i64: 8, 128>}]} {
    %c0 = arith.constant 0 : index
    %c0_0 = arith.constant 0 : index
    %0 = vector.load %arg1[%c0, %c0_0] : memref<8x128xf32, #tpu.memory_space<vmem>>, vector<8x128xf32>
    %c0_1 = arith.constant 0 : index
    %c0_2 = arith.constant 0 : index
    %1 = vector.load %arg8[%c0_1, %c0_2] : memref<128x128xf32, #tpu.memory_space<vmem>>, vector<128x128xf32>
    %cst = arith.constant dense<0.000000e+00> : vector<8x128xf32>
    %2 = tpu.matmul %0, %1, %cst {dimension_numbers = #tpu.dot_dimension_numbers<[1], [0], [0], [1], [0, 0, 1, 1], [], []>} : vector<8x128xf32>, vector<128x128xf32>, vector<8x128xf32> -> vector<8x128xf32>
    %3 = arith.subf %0, %2 : vector<8x128xf32>
    %4 = arith.mulf %3, %3 : vector<8x128xf32>
    %cst_3 = arith.constant dense<0.000000e+00> : vector<8x128xf32>
    %5 = tpu.matmul %4, %1, %cst_3 {dimension_numbers = #tpu.dot_dimension_numbers<[1], [0], [0], [1], [0, 0, 1, 1], [], []>} : vector<8x128xf32>, vector<128x128xf32>, vector<8x128xf32> -> vector<8x128xf32>
    %cst_4 = arith.constant 9.99999974E-6 : f32
    %6 = vector.broadcast %cst_4 : f32 to vector<8x128xf32>
    %7 = arith.addf %5, %6 : vector<8x128xf32>
    %8 = math.rsqrt %7 : vector<8x128xf32>
    %9 = arith.mulf %3, %8 : vector<8x128xf32>
    %c0_5 = arith.constant 0 : index
    %c0_6 = arith.constant 0 : index
    %10 = vector.load %arg2[%c0_5, %c0_6] : memref<1x128xf32, #tpu.memory_space<vmem>>, vector<1x128xf32>
    %11 = vector.broadcast %10 : vector<1x128xf32> to vector<8x128xf32>
    %12 = arith.mulf %9, %11 : vector<8x128xf32>
    %c0_7 = arith.constant 0 : index
    %c0_8 = arith.constant 0 : index
    %13 = vector.load %arg3[%c0_7, %c0_8] : memref<1x128xf32, #tpu.memory_space<vmem>>, vector<1x128xf32>
    %14 = vector.broadcast %13 : vector<1x128xf32> to vector<8x128xf32>
    %15 = arith.addf %12, %14 : vector<8x128xf32>
    %c0_9 = arith.constant 0 : index
    %c0_10 = arith.constant 0 : index
    %16 = vector.load %arg4[%c0_9, %c0_10] : memref<128x256xf32, #tpu.memory_space<vmem>>, vector<128x256xf32>
    %cst_11 = arith.constant dense<0.000000e+00> : vector<8x256xf32>
    %17 = tpu.matmul %15, %16, %cst_11 {dimension_numbers = #tpu.dot_dimension_numbers<[1], [0], [0], [1], [0, 0, 1, 1], [], []>} : vector<8x128xf32>, vector<128x256xf32>, vector<8x256xf32> -> vector<8x256xf32>
    %c0_12 = arith.constant 0 : index
    %c0_13 = arith.constant 0 : index
    %18 = vector.load %arg5[%c0_12, %c0_13] : memref<1x256xf32, #tpu.memory_space<vmem>>, vector<1x256xf32>
    %19 = vector.broadcast %18 : vector<1x256xf32> to vector<8x256xf32>
    %20 = arith.addf %17, %19 : vector<8x256xf32>
    %cst_14 = arith.constant 5.000000e-01 : f32
    %21 = vector.broadcast %cst_14 : f32 to vector<8x256xf32>
    %22 = arith.mulf %21, %20 : vector<8x256xf32>
    %cst_15 = arith.constant 0.707106769 : f32
    %23 = vector.broadcast %cst_15 : f32 to vector<8x256xf32>
    %24 = arith.mulf %20, %23 : vector<8x256xf32>
    %25 = math.erf %24 : vector<8x256xf32>
    %cst_16 = arith.constant 1.000000e+00 : f32
    %26 = vector.broadcast %cst_16 : f32 to vector<8x256xf32>
    %27 = arith.addf %26, %25 : vector<8x256xf32>
    %28 = arith.mulf %22, %27 : vector<8x256xf32>
    %c0_17 = arith.constant 0 : index
    %c0_18 = arith.constant 0 : index
    %29 = vector.load %arg6[%c0_17, %c0_18] : memref<256x128xf32, #tpu.memory_space<vmem>>, vector<256x128xf32>
    %cst_19 = arith.constant dense<0.000000e+00> : vector<8x128xf32>
    %30 = tpu.matmul %28, %29, %cst_19 {dimension_numbers = #tpu.dot_dimension_numbers<[1], [0], [0], [1], [0, 0, 1, 1], [], []>} : vector<8x256xf32>, vector<256x128xf32>, vector<8x128xf32> -> vector<8x128xf32>
    %c0_20 = arith.constant 0 : index
    %c0_21 = arith.constant 0 : index
    %31 = vector.load %arg7[%c0_20, %c0_21] : memref<1x128xf32, #tpu.memory_space<vmem>>, vector<1x128xf32>
    %32 = vector.broadcast %31 : vector<1x128xf32> to vector<8x128xf32>
    %33 = arith.addf %30, %32 : vector<8x128xf32>
    %34 = arith.addf %0, %33 : vector<8x128xf32>
    %c0_22 = arith.constant 0 : index
    %c0_23 = arith.constant 0 : index
    %35 = vector.load %arg9[%c0_22, %c0_23] : memref<8x128xf32, #tpu.memory_space<vmem>>, vector<8x128xf32>
    tpu.vector_store %arg9[%c0_22, %c0_23], %34 {strides = array<i32>} : memref<8x128xf32, #tpu.memory_space<vmem>>, vector<8x128xf32>,
    return
  }
  func.func @transform_0(%arg0: i32) -> (i32, i32) {
    %c0_i32 = arith.constant 0 : i32
    %c0_i32_0 = arith.constant 0 : i32
    return %arg0, %c0_i32 : i32, i32
  }
  func.func @transform_1(%arg0: i32) -> (i32, i32) {
    %c0_i32 = arith.constant 0 : i32
    %c0_i32_0 = arith.constant 0 : i32
    %c0_i32_1 = arith.constant 0 : i32
    return %c0_i32, %c0_i32_0 : i32, i32
  }
  func.func @transform_2(%arg0: i32) -> (i32, i32) {
    %c0_i32 = arith.constant 0 : i32
    %c0_i32_0 = arith.constant 0 : i32
    %c0_i32_1 = arith.constant 0 : i32
    return %c0_i32, %c0_i32_0 : i32, i32
  }
  func.func @transform_3(%arg0: i32) -> (i32, i32) {
    %c0_i32 = arith.constant 0 : i32
    %c0_i32_0 = arith.constant 0 : i32
    %c0_i32_1 = arith.constant 0 : i32
    return %c0_i32, %c0_i32_0 : i32, i32
  }
  func.func @transform_4(%arg0: i32) -> (i32, i32) {
    %c0_i32 = arith.constant 0 : i32
    %c0_i32_0 = arith.constant 0 : i32
    %c0_i32_1 = arith.constant 0 : i32
    return %c0_i32, %c0_i32_0 : i32, i32
  }
  func.func @transform_5(%arg0: i32) -> (i32, i32) {
    %c0_i32 = arith.constant 0 : i32
    %c0_i32_0 = arith.constant 0 : i32
    %c0_i32_1 = arith.constant 0 : i32
    return %c0_i32, %c0_i32_0 : i32, i32
  }
  func.func @transform_6(%arg0: i32) -> (i32, i32) {
    %c0_i32 = arith.constant 0 : i32
    %c0_i32_0 = arith.constant 0 : i32
    %c0_i32_1 = arith.constant 0 : i32
    return %c0_i32, %c0_i32_0 : i32, i32
  }
  func.func @transform_7(%arg0: i32) -> (i32, i32) {
    %c0_i32 = arith.constant 0 : i32
    %c0_i32_0 = arith.constant 0 : i32
    %c0_i32_1 = arith.constant 0 : i32
    return %c0_i32, %c0_i32_0 : i32, i32
  }
  func.func @transform_8(%arg0: i32) -> (i32, i32) {
    %c0_i32 = arith.constant 0 : i32
    %c0_i32_0 = arith.constant 0 : i32
    return %arg0, %c0_i32 : i32, i32
  }
}

</mosaic_0001>

<llo_original>
// kernel: tpu_custom_call.1
$region0: #{tpu_custom_call.1}
  #allocation0 [shape = 'u32[]', space=smem, size = 0x4, offset = 0x4, fixed_abs, tag = 'smem constant byte address 0x4 - core index']
  #allocation1 [shape = 'u32[72,128]{1,0:T(1,128)}', space=vmem, size = 0x9000, scoped, tag = 'internal scratch']
  %s0 = inlined_call_operand.hbm [shape: f32[8,128], index: 0, kind: input, shape index: {}]
  %s1 = inlined_call_operand.hbm [shape: f32[1,128], index: 1, kind: input, shape index: {}]
  %s2 = inlined_call_operand.vmem [shape: f32[1,128], index: 2, kind: input, shape index: {}]
  %s3 = inlined_call_operand.hbm [shape: f32[128,256], index: 3, kind: input, shape index: {}]
  %s4 = inlined_call_operand.vmem [shape: f32[1,256], index: 4, kind: input, shape index: {}]
  %s5 = inlined_call_operand.hbm [shape: f32[256,128], index: 5, kind: input, shape index: {}]
  %s6 = inlined_call_operand.vmem [shape: f32[1,128], index: 6, kind: input, shape index: {}]
  %s7 = inlined_call_operand.hbm [shape: f32[128,128], index: 7, kind: input, shape index: {}]
  %s8 = inlined_call_operand.hbm [shape: f32[8,128], index: 8, kind: output, shape index: {}]
  %s9 = sld [smem:[#allocation0]]
  $region62: #{tpu_custom_call.1} parent=0
    _
  %s11 = ssub.s32 1, %s9
  %s12 = scalar_select 0, %s11, %s9
  $region1: #{tpu_custom_call.1} parent=0
    #allocation2 [shape = 'u8[4096]{0}', space=vmem, size = 0x1000, scoped, tag = 'input window, operand 0, single buffered']
    #allocation3 [shape = 's32[1]{0}', space=sflag, size = 0x4, scoped, tag = 'scoped memory for tpu_custom_call.1']
    #allocation4 [shape = 's32[1]{0}', space=sflag, size = 0x4, scoped, tag = 'scoped memory for tpu_custom_call.1']
    #allocation5 [shape = 'u8[512]{0}', space=vmem, size = 0x400, scoped, tag = 'input window, operand 1, single buffered']
    #allocation6 [shape = 's32[1]{0}', space=sflag, size = 0x4, scoped, tag = 'scoped memory for tpu_custom_call.1']
    #allocation7 [shape = 'u8[131072]{0}', space=vmem, size = 0x20000, scoped, tag = 'input window, operand 3, single buffered']
    #allocation8 [shape = 'u8[131072]{0}', space=vmem, size = 0x20000, scoped, tag = 'input window, operand 5, single buffered']
    #allocation9 [shape = 's32[1]{0}', space=sflag, size = 0x4, scoped, tag = 'scoped memory for tpu_custom_call.1']
    #allocation10 [shape = 'u8[65536]{0}', space=vmem, size = 0x10000, scoped, tag = 'input window, operand 7, single buffered']
    #allocation11 [shape = 'u8[4096]{0}', space=vmem, size = 0x1000, scoped, tag = 'output window, operand 0, single buffered']
    %13 = vsyncpa [#allocation3], 0
    %14 = vsyncpa [#allocation6], 0
    %15 = vsyncpa [#allocation9], 0
    %16 = vsyncpa [#allocation4], 0
    // Predicated region
    $region2: #{tpu_custom_call.1} parent=1 // pred_check
      _
    $region3: #{tpu_custom_call.1} parent=1 // pred_check_branch
      %18 = sbr.rel (0) target = $region5
    $region4: #{tpu_custom_call.1} parent=1 // pred_region
      %20 = vsyncadd [#allocation3], 0
      %s22 = sshll.u32 %s0, 4
      %s23 = int_to_ptr.hbm [resolvable:$true] %s22
      %s24 = sshll.u32 [#allocation2], 4
      %s25 = int_to_ptr.vmem [resolvable:$true] %s24
      %27 = dma.hbm_to_vmem [thread:$0]  %s23, 128, %s25, [#allocation3]
    $region5: #{tpu_custom_call.1} parent=1 // pred_fallthru
      _
    // Predicated region
    $region6: #{tpu_custom_call.1} parent=1 // pred_check
      _
    $region7: #{tpu_custom_call.1} parent=1 // pred_check_branch
      %29 = sbr.rel (0) target = $region9
    $region8: #{tpu_custom_call.1} parent=1 // pred_region
      %31 = vsyncadd [#allocation6], 0
      %s33 = sshll.u32 %s1, 4
      %s34 = int_to_ptr.hbm [resolvable:$true] %s33
      %s35 = sshll.u32 [#allocation5], 4
      %s36 = int_to_ptr.vmem [resolvable:$true] %s35
      %38 = dma.hbm_to_vmem [thread:$0]  %s34, 16, %s36, [#allocation6]
    $region9: #{tpu_custom_call.1} parent=1 // pred_fallthru
      _
    // Predicated region
    $region10: #{tpu_custom_call.1} parent=1 // pred_check
      _
    $region11: #{tpu_custom_call.1} parent=1 // pred_check_branch
      %40 = sbr.rel (0) target = $region13
    $region12: #{tpu_custom_call.1} parent=1 // pred_region
      _
    $region13: #{tpu_custom_call.1} parent=1 // pred_fallthru
      _
    // Predicated region
    $region14: #{tpu_custom_call.1} parent=1 // pred_check
      _
    $region15: #{tpu_custom_call.1} parent=1 // pred_check_branch
      %42 = sbr.rel (0) target = $region17
    $region16: #{tpu_custom_call.1} parent=1 // pred_region
      %44 = vsyncadd [#allocation6], 0
      %s45 = sshll.u32 %s3, 4
      %s46 = int_to_ptr.hbm [resolvable:$true] %s45
      %s47 = sshll.u32 [#allocation7], 4
      %s48 = int_to_ptr.vmem [resolvable:$true] %s47
      %53 = dma.hbm_to_vmem [thread:$0]  %s46, 4096, %s48, [#allocation6], 256, 256, 16
    $region17: #{tpu_custom_call.1} parent=1 // pred_fallthru
      _
    // Predicated region
    $region18: #{tpu_custom_call.1} parent=1 // pred_check
      _
    $region19: #{tpu_custom_call.1} parent=1 // pred_check_branch
      %55 = sbr.rel (0) target = $region21
    $region20: #{tpu_custom_call.1} parent=1 // pred_region
      _
    $region21: #{tpu_custom_call.1} parent=1 // pred_fallthru
      _
    // Predicated region
    $region22: #{tpu_custom_call.1} parent=1 // pred_check
      _
    $region23: #{tpu_custom_call.1} parent=1 // pred_check_branch
      %57 = sbr.rel (0) target = $region25
    $region24: #{tpu_custom_call.1} parent=1 // pred_region
      %59 = vsyncadd [#allocation9], 0
      %s60 = sshll.u32 %s5, 4
      %s61 = int_to_ptr.hbm [resolvable:$true] %s60
      %s62 = sshll.u32 [#allocation8], 4
      %s63 = int_to_ptr.vmem [resolvable:$true] %s62
      %68 = dma.hbm_to_vmem [thread:$0]  %s61, 4096, %s63, [#allocation9], 128, 128, 8
    $region25: #{tpu_custom_call.1} parent=1 // pred_fallthru
      _
    // Predicated region
    $region26: #{tpu_custom_call.1} parent=1 // pred_check
      _
    $region27: #{tpu_custom_call.1} parent=1 // pred_check_branch
      %70 = sbr.rel (0) target = $region29
    $region28: #{tpu_custom_call.1} parent=1 // pred_region
      _
    $region29: #{tpu_custom_call.1} parent=1 // pred_fallthru
      _
    // Predicated region
    $region30: #{tpu_custom_call.1} parent=1 // pred_check
      _
    $region31: #{tpu_custom_call.1} parent=1 // pred_check_branch
      %72 = sbr.rel (0) target = $region33
    $region32: #{tpu_custom_call.1} parent=1 // pred_region
      %74 = vsyncadd [#allocation9], 0
      %s75 = sshll.u32 %s7, 4
      %s76 = int_to_ptr.hbm [resolvable:$true] %s75
      %s77 = sshll.u32 [#allocation10], 4
      %s78 = int_to_ptr.vmem [resolvable:$true] %s77
      %83 = dma.hbm_to_vmem [thread:$0]  %s76, 2048, %s78, [#allocation9], 128, 128, 8
    $region33: #{tpu_custom_call.1} parent=1 // pred_fallthru
      _
    // Predicated region
    $region34: #{tpu_custom_call.1} parent=1 // pred_check
      _
    $region35: #{tpu_custom_call.1} parent=1 // pred_check_branch
      %85 = sbr.rel (0) target = $region37
    $region36: #{tpu_custom_call.1} parent=1 // pred_region
      %87 = dma.done [#allocation3], 128
    $region37: #{tpu_custom_call.1} parent=1 // pred_fallthru
      _
    // Predicated region
    $region38: #{tpu_custom_call.1} parent=1 // pred_check
      _
    $region39: #{tpu_custom_call.1} parent=1 // pred_check_branch
      %89 = sbr.rel (0) target = $region41
    $region40: #{tpu_custom_call.1} parent=1 // pred_region
      %91 = dma.done [#allocation6], 16
    $region41: #{tpu_custom_call.1} parent=1 // pred_fallthru
      _
    // Predicated region
    $region42: #{tpu_custom_call.1} parent=1 // pred_check
      _
    $region43: #{tpu_custom_call.1} parent=1 // pred_check_branch
      %93 = sbr.rel (0) target = $region45
    $region44: #{tpu_custom_call.1} parent=1 // pred_region
      %95 = dma.done [#allocation6], 4096
    $region45: #{tpu_custom_call.1} parent=1 // pred_fallthru
      _
    // Predicated region
    $region46: #{tpu_custom_call.1} parent=1 // pred_check
      _
    $region47: #{tpu_custom_call.1} parent=1 // pred_check_branch
      %97 = sbr.rel (0) target = $region49
    $region48: #{tpu_custom_call.1} parent=1 // pred_region
      %99 = dma.done [#allocation9], 4096
    $region49: #{tpu_custom_call.1} parent=1 // pred_fallthru
      _
    // Predicated region
    $region50: #{tpu_custom_call.1} parent=1 // pred_check
      _
    $region51: #{tpu_custom_call.1} parent=1 // pred_check_branch
      %101 = sbr.rel (0) target = $region53
    $region52: #{tpu_custom_call.1} parent=1 // pred_region
      %103 = dma.done [#allocation9], 2048
    $region53: #{tpu_custom_call.1} parent=1 // pred_fallthru
      _
    %v104 = vld [vmem:[#allocation2] sm:$0xff]
    %v105 = vld [vmem:[#allocation10] sm:$0xff]
    %v106 = vld [vmem:[#allocation10 + $0x8] sm:$0xff]
    %v107 = vld [vmem:[#allocation10 + $0x10] sm:$0xff]
    %v108 = vld [vmem:[#allocation10 + $0x18] sm:$0xff]
    %v109 = vld [vmem:[#allocation10 + $0x20] sm:$0xff]
    %v110 = vld [vmem:[#allocation10 + $0x28] sm:$0xff]
    %v111 = vld [vmem:[#allocation10 + $0x30] sm:$0xff]
    %v112 = vld [vmem:[#allocation10 + $0x38] sm:$0xff]
    %v113 = vld [vmem:[#allocation10 + $0x40] sm:$0xff]
    %v114 = vld [vmem:[#allocation10 + $0x48] sm:$0xff]
    %v115 = vld [vmem:[#allocation10 + $0x50] sm:$0xff]
    %v116 = vld [vmem:[#allocation10 + $0x58] sm:$0xff]
    %v117 = vld [vmem:[#allocation10 + $0x60] sm:$0xff]
    %v118 = vld [vmem:[#allocation10 + $0x68] sm:$0xff]
    %v119 = vld [vmem:[#allocation10 + $0x70] sm:$0xff]
    %v120 = vld [vmem:[#allocation10 + $0x78] sm:$0xff]
    %121 = vmatpush.msra.mxu0 %v120
    %122 = vmatpush.msra.mxu0 %v119
    %123 = vmatpush.msra.mxu0 %v118
    %124 = vmatpush.msra.mxu0 %v117
    %125 = vmatpush.msra.mxu0 %v116
    %126 = vmatpush.msra.mxu0 %v115
    %127 = vmatpush.msra.mxu0 %v114
    %128 = vmatpush.msra.mxu0 %v113
    %129 = vmatpush.msra.mxu0 %v112
    %130 = vmatpush.msra.mxu0 %v111
    %131 = vmatpush.msra.mxu0 %v110
    %132 = vmatpush.msra.mxu0 %v109
    %133 = vmatpush.msra.mxu0 %v108
    %134 = vmatpush.msra.mxu0 %v107
    %135 = vmatpush.msra.mxu0 %v106
    %136 = vmatpush.msra.mxu0 %v105
    %137 = vmatmul.f32.gmra.mxu0 %v104
    %v138 = vpop.f32.mrf.mxu0
    %v139 = vadd.f32 0.0, %v138
    %140 = vdwg.mxu0
    %v141 = vsub.f32 %v104, %v139
    %v142 = vmul.f32 %v141, %v141
    %143 = vmatpush.msra.mxu0 %v120
    %144 = vmatpush.msra.mxu0 %v119
    %145 = vmatpush.msra.mxu0 %v118
    %146 = vmatpush.msra.mxu0 %v117
    %147 = vmatpush.msra.mxu0 %v116
    %148 = vmatpush.msra.mxu0 %v115
    %149 = vmatpush.msra.mxu0 %v114
    %150 = vmatpush.msra.mxu0 %v113
    %151 = vmatpush.msra.mxu0 %v112
    %152 = vmatpush.msra.mxu0 %v111
    %153 = vmatpush.msra.mxu0 %v110
    %154 = vmatpush.msra.mxu0 %v109
    %155 = vmatpush.msra.mxu0 %v108
    %156 = vmatpush.msra.mxu0 %v107
    %157 = vmatpush.msra.mxu0 %v106
    %158 = vmatpush.msra.mxu0 %v105
    %159 = vmatmul.f32.gmra.mxu0 %v142
    %v160 = vpop.f32.mrf.mxu0
    %v161 = vadd.f32 1e-05, %v160
    %162 = vdwg.mxu0
    %v163 = vrsqrt.pop %v161
    %v164 = vmul.f32 %v163, %v161
    %v165 = vmul.f32 %v164, %v163
    %v166 = vmul.f32 0.5, %v165
    %v167 = vsub.f32 1.5, %v166
    %v168 = vmul.f32 %v163, %v167
    %vm169 = vweird.f32 %v161
    %vm170 = vweird.f32 %v163
    %vm171 = vmor %vm169, %vm170
    %v172 = vsel %vm171, %v163, %v168
    %v173 = vmul.f32 %v141, %v172
    %v174 = vld [vmem:[#allocation5] sm:$0x1]
    %v176 = vperm.slane %v174, 0
    %v178 = vmul.f32 %v173, %v176
    %v179 = vld [vmem:[%s2] sm:$0x1]
    %v181 = vperm.slane %v179, 0
    %v183 = vadd.f32 %v178, %v181
    %v184 = vld [vmem:[#allocation7] sm:$0xff]
    %v185 = vld [vmem:[#allocation7 + $0x8] sm:$0xff]
    %v186 = vld [vmem:[#allocation7 + $0x10] sm:$0xff]
    %v187 = vld [vmem:[#allocation7 + $0x18] sm:$0xff]
    %v188 = vld [vmem:[#allocation7 + $0x20] sm:$0xff]
    %v189 = vld [vmem:[#allocation7 + $0x28] sm:$0xff]
    %v190 = vld [vmem:[#allocation7 + $0x30] sm:$0xff]
    %v191 = vld [vmem:[#allocation7 + $0x38] sm:$0xff]
    %v192 = vld [vmem:[#allocation7 + $0x40] sm:$0xff]
    %v193 = vld [vmem:[#allocation7 + $0x48] sm:$0xff]
    %v194 = vld [vmem:[#allocation7 + $0x50] sm:$0xff]
    %v195 = vld [vmem:[#allocation7 + $0x58] sm:$0xff]
    %v196 = vld [vmem:[#allocation7 + $0x60] sm:$0xff]
    %v197 = vld [vmem:[#allocation7 + $0x68] sm:$0xff]
    %v198 = vld [vmem:[#allocation7 + $0x70] sm:$0xff]
    %v199 = vld [vmem:[#allocation7 + $0x78] sm:$0xff]
    %v200 = vld [vmem:[#allocation7 + $0x80] sm:$0xff]
    %v201 = vld [vmem:[#allocation7 + $0x88] sm:$0xff]
    %v202 = vld [vmem:[#allocation7 + $0x90] sm:$0xff]
    %v203 = vld [vmem:[#allocation7 + $0x98] sm:$0xff]
    %v204 = vld [vmem:[#allocation7 + $0xa0] sm:$0xff]
    %v205 = vld [vmem:[#allocation7 + $0xa8] sm:$0xff]
    %v206 = vld [vmem:[#allocation7 + $0xb0] sm:$0xff]
    %v207 = vld [vmem:[#allocation7 + $0xb8] sm:$0xff]
    %v208 = vld [vmem:[#allocation7 + $0xc0] sm:$0xff]
    %v209 = vld [vmem:[#allocation7 + $0xc8] sm:$0xff]
    %v210 = vld [vmem:[#allocation7 + $0xd0] sm:$0xff]
    %v211 = vld [vmem:[#allocation7 + $0xd8] sm:$0xff]
    %v212 = vld [vmem:[#allocation7 + $0xe0] sm:$0xff]
    %v213 = vld [vmem:[#allocation7 + $0xe8] sm:$0xff]
    %v214 = vld [vmem:[#allocation7 + $0xf0] sm:$0xff]
    %v215 = vld [vmem:[#allocation7 + $0xf8] sm:$0xff]
    %v216 = vld [vmem:[%s4] sm:$0x3]
    %v218 = vperm.slane %v216, 0
    %v219 = vperm.slane %v216, 1
    %222 = vmatpush.msra.mxu0 %v214
    %223 = vmatpush.msra.mxu0 %v212
    %224 = vmatpush.msra.mxu0 %v210
    %225 = vmatpush.msra.mxu0 %v208
    %226 = vmatpush.msra.mxu0 %v206
    %227 = vmatpush.msra.mxu0 %v204
    %228 = vmatpush.msra.mxu0 %v202
    %229 = vmatpush.msra.mxu0 %v200
    %230 = vmatpush.msra.mxu0 %v198
    %231 = vmatpush.msra.mxu0 %v196
    %232 = vmatpush.msra.mxu0 %v194
    %233 = vmatpush.msra.mxu0 %v192
    %234 = vmatpush.msra.mxu0 %v190
    %235 = vmatpush.msra.mxu0 %v188
    %236 = vmatpush.msra.mxu0 %v186
    %237 = vmatpush.msra.mxu0 %v184
    %238 = vmatmul.f32.gmra.mxu0 %v183
    %v239 = vpop.f32.mrf.mxu0
    %v240 = vadd.f32 %v218, %v239
    %241 = vdwg.mxu0
    %242 = vmatpush.msra.mxu0 %v215
    %243 = vmatpush.msra.mxu0 %v213
    %244 = vmatpush.msra.mxu0 %v211
    %245 = vmatpush.msra.mxu0 %v209
    %246 = vmatpush.msra.mxu0 %v207
    %247 = vmatpush.msra.mxu0 %v205
    %248 = vmatpush.msra.mxu0 %v203
    %249 = vmatpush.msra.mxu0 %v201
    %250 = vmatpush.msra.mxu0 %v199
    %251 = vmatpush.msra.mxu0 %v197
    %252 = vmatpush.msra.mxu0 %v195
    %253 = vmatpush.msra.mxu0 %v193
    %254 = vmatpush.msra.mxu0 %v191
    %255 = vmatpush.msra.mxu0 %v189
    %256 = vmatpush.msra.mxu0 %v187
    %257 = vmatpush.msra.mxu0 %v185
    %258 = vmatmul.f32.gmra.mxu0 %v183
    %v259 = vpop.f32.mrf.mxu0
    %v260 = vadd.f32 %v219, %v259
    %261 = vdwg.mxu0
    %v262 = vmul.f32 %v240, 0.5
    %v263 = vmul.f32 %v260, 0.5
    %v264 = vmul.f32 %v240, 0.70710677
    %v265 = vmul.f32 %v260, 0.70710677
    %v266 = vmul.f32 %v264, %v264
    %v267 = vmin.f32 16.0, %v266
    %v268 = vmul.f32 %v267, 2.1237322e-06
    %v269 = vadd.f32 %v268, 0.00028619796
    %v270 = vmul.f32 %v267, %v269
    %v271 = vadd.f32 %v270, 0.0036580483
    %v272 = vmul.f32 %v267, %v271
    %v273 = vadd.f32 %v272, 0.05243302
    %v274 = vmul.f32 %v267, %v273
    %v275 = vadd.f32 %v274, 0.18741608
    %v276 = vmul.f32 %v267, %v275
    %v277 = vadd.f32 %v276, 1.1283791
    %v278 = vmul.f32 %v264, %v277
    %v279 = vmul.f32 %v267, 3.8918573e-05
    %v280 = vadd.f32 %v279, 0.001143296
    %v281 = vmul.f32 %v267, %v280
    %v282 = vadd.f32 %v281, 0.014752088
    %v283 = vmul.f32 %v267, %v282
    %v284 = vadd.f32 %v283, 0.112945676
    %v285 = vmul.f32 %v267, %v284
    %v286 = vadd.f32 %v285, 0.4994258
    %v287 = vmul.f32 %v267, %v286
    %v288 = vadd.f32 %v287, 1.0
    %v289 = vrcp.pop %v288
    %v290 = vmul.f32 %v288, %v289
    %v291 = vsub.f32 1.0, %v290
    %v292 = vmul.f32 %v289, %v291
    %v293 = vadd.f32 %v289, %v292
    %vm294 = vweird.f32 %v288
    %vm295 = vweird.f32 %v289
    %vm296 = vmor %vm294, %vm295
    %v297 = vsel %vm296, %v289, %v293
    %v298 = vand.u32 2147483647, %v288
    %vm299 = vcmp.eq.f32.partialorder %v298, 8.507059e+37
    %v300 = vand.u32 %v288, 2147483648
    %v301 = vor.u32 1.1754944e-38, %v300
    %v302 = vsel %vm299, %v301, %v297
    %v303 = vmul.f32 %v278, %v302
    %v304 = vmin.f32 %v303, 1.0
    %v305 = vmax.f32 %v304, -1.0
    %v306 = vmul.f32 %v265, %v265
    %v307 = vmin.f32 16.0, %v306
    %v308 = vmul.f32 %v307, 2.1237322e-06
    %v309 = vadd.f32 %v308, 0.00028619796
    %v310 = vmul.f32 %v307, %v309
    %v311 = vadd.f32 %v310, 0.0036580483
    %v312 = vmul.f32 %v307, %v311
    %v313 = vadd.f32 %v312, 0.05243302
    %v314 = vmul.f32 %v307, %v313
    %v315 = vadd.f32 %v314, 0.18741608
    %v316 = vmul.f32 %v307, %v315
    %v317 = vadd.f32 %v316, 1.1283791
    %v318 = vmul.f32 %v265, %v317
    %v319 = vmul.f32 %v307, 3.8918573e-05
    %v320 = vadd.f32 %v319, 0.001143296
    %v321 = vmul.f32 %v307, %v320
    %v322 = vadd.f32 %v321, 0.014752088
    %v323 = vmul.f32 %v307, %v322
    %v324 = vadd.f32 %v323, 0.112945676
    %v325 = vmul.f32 %v307, %v324
    %v326 = vadd.f32 %v325, 0.4994258
    %v327 = vmul.f32 %v307, %v326
    %v328 = vadd.f32 %v327, 1.0
    %v329 = vrcp.pop %v328
    %v330 = vmul.f32 %v328, %v329
    %v331 = vsub.f32 1.0, %v330
    %v332 = vmul.f32 %v329, %v331
    %v333 = vadd.f32 %v329, %v332
    %vm334 = vweird.f32 %v328
    %vm335 = vweird.f32 %v329
    %vm336 = vmor %vm334, %vm335
    %v337 = vsel %vm336, %v329, %v333
    %v338 = vand.u32 2147483647, %v328
    %vm339 = vcmp.eq.f32.partialorder %v338, 8.507059e+37
    %v340 = vand.u32 %v328, 2147483648
    %v341 = vor.u32 1.1754944e-38, %v340
    %v342 = vsel %vm339, %v341, %v337
    %v343 = vmul.f32 %v318, %v342
    %v344 = vmin.f32 %v343, 1.0
    %v345 = vmax.f32 %v344, -1.0
    %v346 = vadd.f32 %v305, 1.0
    %v347 = vadd.f32 %v345, 1.0
    %v348 = vmul.f32 %v262, %v346
    %v349 = vmul.f32 %v263, %v347
    %v350 = vld [vmem:[#allocation8] sm:$0xff]
    %v351 = vld [vmem:[#allocation8 + $0x8] sm:$0xff]
    %v352 = vld [vmem:[#allocation8 + $0x10] sm:$0xff]
    %v353 = vld [vmem:[#allocation8 + $0x18] sm:$0xff]
    %v354 = vld [vmem:[#allocation8 + $0x20] sm:$0xff]
    %v355 = vld [vmem:[#allocation8 + $0x28] sm:$0xff]
    %v356 = vld [vmem:[#allocation8 + $0x30] sm:$0xff]
    %v357 = vld [vmem:[#allocation8 + $0x38] sm:$0xff]
    %v358 = vld [vmem:[#allocation8 + $0x40] sm:$0xff]
    %v359 = vld [vmem:[#allocation8 + $0x48] sm:$0xff]
    %v360 = vld [vmem:[#allocation8 + $0x50] sm:$0xff]
    %v361 = vld [vmem:[#allocation8 + $0x58] sm:$0xff]
    %v362 = vld [vmem:[#allocation8 + $0x60] sm:$0xff]
    %v363 = vld [vmem:[#allocation8 + $0x68] sm:$0xff]
    %v364 = vld [vmem:[#allocation8 + $0x70] sm:$0xff]
    %v365 = vld [vmem:[#allocation8 + $0x78] sm:$0xff]
    %v366 = vld [vmem:[#allocation8 + $0x80] sm:$0xff]
    %v367 = vld [vmem:[#allocation8 + $0x88] sm:$0xff]
    %v368 = vld [vmem:[#allocation8 + $0x90] sm:$0xff]
    %v369 = vld [vmem:[#allocation8 + $0x98] sm:$0xff]
    %v370 = vld [vmem:[#allocation8 + $0xa0] sm:$0xff]
    %v371 = vld [vmem:[#allocation8 + $0xa8] sm:$0xff]
    %v372 = vld [vmem:[#allocation8 + $0xb0] sm:$0xff]
    %v373 = vld [vmem:[#allocation8 + $0xb8] sm:$0xff]
    %v374 = vld [vmem:[#allocation8 + $0xc0] sm:$0xff]
    %v375 = vld [vmem:[#allocation8 + $0xc8] sm:$0xff]
    %v376 = vld [vmem:[#allocation8 + $0xd0] sm:$0xff]
    %v377 = vld [vmem:[#allocation8 + $0xd8] sm:$0xff]
    %v378 = vld [vmem:[#allocation8 + $0xe0] sm:$0xff]
    %v379 = vld [vmem:[#allocation8 + $0xe8] sm:$0xff]
    %v380 = vld [vmem:[#allocation8 + $0xf0] sm:$0xff]
    %v381 = vld [vmem:[#allocation8 + $0xf8] sm:$0xff]
    %v382 = vld [vmem:[%s6] sm:$0x1]
    %v384 = vperm.slane %v382, 0
    %386 = vmatpush.msra.mxu0 %v365
    %387 = vmatpush.msra.mxu0 %v364
    %388 = vmatpush.msra.mxu0 %v363
    %389 = vmatpush.msra.mxu0 %v362
    %390 = vmatpush.msra.mxu0 %v361
    %391 = vmatpush.msra.mxu0 %v360
    %392 = vmatpush.msra.mxu0 %v359
    %393 = vmatpush.msra.mxu0 %v358
    %394 = vmatpush.msra.mxu0 %v357
    %395 = vmatpush.msra.mxu0 %v356
    %396 = vmatpush.msra.mxu0 %v355
    %397 = vmatpush.msra.mxu0 %v354
    %398 = vmatpush.msra.mxu0 %v353
    %399 = vmatpush.msra.mxu0 %v352
    %400 = vmatpush.msra.mxu0 %v351
    %401 = vmatpush.msra.mxu0 %v350
    %402 = vmatmul.f32.gmra.mxu0 %v348
    %v403 = vpop.f32.mrf.mxu0
    %v404 = vadd.f32 %v384, %v403
    %405 = vdwg.mxu0
    %406 = vmatpush.msra.mxu0 %v381
    %407 = vmatpush.msra.mxu0 %v380
    %408 = vmatpush.msra.mxu0 %v379
    %409 = vmatpush.msra.mxu0 %v378
    %410 = vmatpush.msra.mxu0 %v377
    %411 = vmatpush.msra.mxu0 %v376
    %412 = vmatpush.msra.mxu0 %v375
    %413 = vmatpush.msra.mxu0 %v374
    %414 = vmatpush.msra.mxu0 %v373
    %415 = vmatpush.msra.mxu0 %v372
    %416 = vmatpush.msra.mxu0 %v371
    %417 = vmatpush.msra.mxu0 %v370
    %418 = vmatpush.msra.mxu0 %v369
    %419 = vmatpush.msra.mxu0 %v368
    %420 = vmatpush.msra.mxu0 %v367
    %421 = vmatpush.msra.mxu0 %v366
    %422 = vmatmul.f32.gmra.mxu0 %v349
    %v423 = vpop.f32.mrf.mxu0
    %v424 = vadd.f32 %v404, %v423
    %425 = vdwg.mxu0
    %v426 = vadd.f32 %v104, %v424
    %427 = vst [vmem:[#allocation11] sm:$0xff] %v426
    // Predicated region
    $region54: #{tpu_custom_call.1} parent=1 // pred_check
      _
    $region55: #{tpu_custom_call.1} parent=1 // pred_check_branch
      %429 = sbr.rel (0) target = $region57
    $region56: #{tpu_custom_call.1} parent=1 // pred_region
      %431 = vsyncadd [#allocation4], 0
      %s433 = sshll.u32 [#allocation11], 4
      %s434 = int_to_ptr.vmem [resolvable:$true] %s433
      %s435 = sshll.u32 %s8, 4
      %s436 = int_to_ptr.hbm [resolvable:$true] %s435
      %438 = dma.vmem_to_hbm [thread:$0]  %s434, 128, %s436, [#allocation4]
    $region57: #{tpu_custom_call.1} parent=1 // pred_fallthru
      _
    // Predicated region
    $region58: #{tpu_custom_call.1} parent=1 // pred_check
      _
    $region59: #{tpu_custom_call.1} parent=1 // pred_check_branch
      %440 = sbr.rel (0) target = $region61
    $region60: #{tpu_custom_call.1} parent=1 // pred_region
      %442 = dma.done [#allocation4], 128
    $region61: #{tpu_custom_call.1} parent=1 // pred_fallthru
      _
    %443 = vsyncpa [#allocation3], 1
    %444 = vsyncpa [#allocation6], 1
    %445 = vsyncpa [#allocation9], 1
    %446 = vsyncpa [#allocation4], 1

</llo_original>
